<compile_context>
chip_gen: v7x
topology: tpu7x:2x2x1
jax: 0.10.0
libtpu: 0.0.40
codegen_flags: <defaults>
</compile_context>

<pallas_src>
import functools

import jax
import jax.numpy as jnp
from jax.experimental import pallas as pl
from jax.experimental.pallas import tpu as pltpu

GROUPS = 64
BASE_WIDTH = 4
EXPANSION = 4
BLOCKS = (3, 4, 23, 3)
PLANES = (64, 128, 256, 512)
STRIDES = (1, 2, 2, 2)
CHUNK = 128  # merged-group lane width for the grouped 3x3 conv

_VMEM = pl.BlockSpec(memory_space=pltpu.MemorySpace.VMEM)


def _round_up(x, m):
    return (x + m - 1) // m * m


def _default_vmem_limit():
    # Size per generation: ~48 MiB on v7x (64 MiB physical), ~96 MiB on v5e/v6e.
    try:
        cap = int(pltpu.get_tpu_info().vmem_capacity_bytes)
        return min((cap * 3) // 4, 100 * 1024 * 1024)
    except Exception:
        return 48 * 1024 * 1024


_VMEM_LIMIT = _default_vmem_limit()


# ----------------------------- Pallas kernels ------------------------------

def _mm_bn_kernel(a_ref, w_ref, s_ref, b_ref, o_ref, acc_ref, *, relu):
    @pl.when(pl.program_id(1) == 0)
    def _():
        acc_ref[...] = jnp.zeros_like(acc_ref)

    acc_ref[...] += jnp.dot(a_ref[...], w_ref[...],
                            preferred_element_type=jnp.float32)

    @pl.when(pl.program_id(1) == pl.num_programs(1) - 1)
    def _():
        y = acc_ref[...] * s_ref[...] + b_ref[...]
        if relu:
            y = jnp.maximum(y, 0.0)
        o_ref[...] = y.astype(o_ref.dtype)


def _mm_bn_res_relu_kernel(a_ref, w_ref, s_ref, b_ref, r_ref, o_ref, acc_ref):
    @pl.when(pl.program_id(1) == 0)
    def _():
        acc_ref[...] = jnp.zeros_like(acc_ref)

    acc_ref[...] += jnp.dot(a_ref[...], w_ref[...],
                            preferred_element_type=jnp.float32)

    @pl.when(pl.program_id(1) == pl.num_programs(1) - 1)
    def _():
        y = (acc_ref[...] * s_ref[...] + b_ref[...]
             + r_ref[...].astype(jnp.float32))
        o_ref[...] = jnp.maximum(y, 0.0).astype(o_ref.dtype)


def _grouped_chunk_kernel(a_ref, w_ref, s_ref, b_ref, o_ref):
    # a: (tm, 9, 128) bf16 patches for one 128-channel chunk
    # w: (9, 128, 128) bf16 block-diagonal (within-chunk) weights
    acc = jnp.dot(a_ref[:, 0, :], w_ref[0], preferred_element_type=jnp.float32)
    for t in range(1, 9):
        acc += jnp.dot(a_ref[:, t, :], w_ref[t],
                       preferred_element_type=jnp.float32)
    y = acc * s_ref[...] + b_ref[...]
    o_ref[...] = jnp.maximum(y, 0.0).astype(o_ref.dtype)


def _max9_kernel(p_ref, o_ref):
    # p: (tm, 9, C) -> max over the 3x3 window axis (kept as small live values)
    y = p_ref[:, 0, :]
    for t in range(1, 9):
        y = jnp.maximum(y, p_ref[:, t, :])
    o_ref[...] = y


def _avgpool_fc_kernel(x_ref, w_ref, b_ref, o_ref):
    pooled = jnp.mean(x_ref[...].astype(jnp.float32), axis=1)
    o_ref[...] = (jnp.dot(pooled.astype(jnp.bfloat16), w_ref[...],
                          preferred_element_type=jnp.float32) + b_ref[...])


# ------------------------------ Pallas wrappers -----------------------------

def _pick_tiles(m, k):
    tm = 256 if m >= 256 else _round_up(max(m, 1), 8)
    mp = _round_up(m, tm)
    kp = _round_up(k, 128)
    tk = min(kp, 512)
    kp = _round_up(kp, tk)
    return tm, tk, mp, kp


@functools.partial(jax.jit, static_argnames=("relu",))
def matmul_bn(a, w, scale, bias, *, relu):
    m, k = a.shape
    n = w.shape[1]
    tm, tk, mp, kp = _pick_tiles(m, k)
    a = jnp.pad(a.astype(jnp.bfloat16), ((0, mp - m), (0, kp - k)))
    wq = jnp.pad(w.astype(jnp.bfloat16), ((0, kp - k), (0, 0)))
    cost = pl.CostEstimate(flops=2 * mp * kp * n, transcendentals=0,
                           bytes_accessed=mp * kp * 2 + kp * n * 2 + mp * n * 2)
    out = pl.pallas_call(
        functools.partial(_mm_bn_kernel, relu=relu),
        out_shape=jax.ShapeDtypeStruct((mp, n), jnp.bfloat16),
        grid=(mp // tm, kp // tk),
        in_specs=[
            pl.BlockSpec((tm, tk), lambda i, kk: (i, kk)),
            pl.BlockSpec((tk, n), lambda i, kk: (kk, 0)),
            pl.BlockSpec((1, n), lambda i, kk: (0, 0)),
            pl.BlockSpec((1, n), lambda i, kk: (0, 0)),
        ],
        out_specs=pl.BlockSpec((tm, n), lambda i, kk: (i, 0)),
        scratch_shapes=[pltpu.VMEM((tm, n), jnp.float32)],
        compiler_params=pltpu.CompilerParams(
            dimension_semantics=("parallel", "arbitrary"),
            vmem_limit_bytes=_VMEM_LIMIT),
        cost_estimate=cost,
    )(a, wq, scale.reshape(1, n).astype(jnp.float32),
      bias.reshape(1, n).astype(jnp.float32))
    return out[:m]


@jax.jit
def matmul_bn_res_relu(a, w, scale, bias, res):
    m, k = a.shape
    n = w.shape[1]
    tm, tk, mp, kp = _pick_tiles(m, k)
    a = jnp.pad(a.astype(jnp.bfloat16), ((0, mp - m), (0, kp - k)))
    wq = jnp.pad(w.astype(jnp.bfloat16), ((0, kp - k), (0, 0)))
    r = jnp.pad(res.astype(jnp.bfloat16), ((0, mp - m), (0, 0)))
    cost = pl.CostEstimate(
        flops=2 * mp * kp * n, transcendentals=0,
        bytes_accessed=mp * kp * 2 + kp * n * 2 + 2 * mp * n * 2)
    out = pl.pallas_call(
        _mm_bn_res_relu_kernel,
        out_shape=jax.ShapeDtypeStruct((mp, n), jnp.bfloat16),
        grid=(mp // tm, kp // tk),
        in_specs=[
            pl.BlockSpec((tm, tk), lambda i, kk: (i, kk)),
            pl.BlockSpec((tk, n), lambda i, kk: (kk, 0)),
            pl.BlockSpec((1, n), lambda i, kk: (0, 0)),
            pl.BlockSpec((1, n), lambda i, kk: (0, 0)),
            pl.BlockSpec((tm, n), lambda i, kk: (i, 0)),
        ],
        out_specs=pl.BlockSpec((tm, n), lambda i, kk: (i, 0)),
        scratch_shapes=[pltpu.VMEM((tm, n), jnp.float32)],
        compiler_params=pltpu.CompilerParams(
            dimension_semantics=("parallel", "arbitrary"),
            vmem_limit_bytes=_VMEM_LIMIT),
        cost_estimate=cost,
    )(a, wq, scale.reshape(1, n).astype(jnp.float32),
      bias.reshape(1, n).astype(jnp.float32), r)
    return out[:m]


@jax.jit
def grouped_conv_mm(a, w_chunks, scale, bias):
    """a: (M, 9, width) bf16 patches; w_chunks: (n_chunks*9, 128, 128) bf16."""
    m, _, width = a.shape
    n_chunks = width // CHUNK
    tm = 256 if m >= 256 else _round_up(max(m, 1), 8)
    mp = _round_up(m, tm)
    a = jnp.pad(a.astype(jnp.bfloat16), ((0, mp - m), (0, 0), (0, 0)))
    cost = pl.CostEstimate(
        flops=2 * mp * 9 * CHUNK * width, transcendentals=0,
        bytes_accessed=mp * 9 * width * 2 + n_chunks * 9 * CHUNK * CHUNK * 2
        + mp * width * 2)
    out = pl.pallas_call(
        _grouped_chunk_kernel,
        out_shape=jax.ShapeDtypeStruct((mp, width), jnp.bfloat16),
        grid=(mp // tm, n_chunks),
        in_specs=[
            pl.BlockSpec((tm, 9, CHUNK), lambda i, c: (i, 0, c)),
            pl.BlockSpec((9, CHUNK, CHUNK), lambda i, c: (c, 0, 0)),
            pl.BlockSpec((1, CHUNK), lambda i, c: (0, c)),
            pl.BlockSpec((1, CHUNK), lambda i, c: (0, c)),
        ],
        out_specs=pl.BlockSpec((tm, CHUNK), lambda i, c: (i, c)),
        compiler_params=pltpu.CompilerParams(
            dimension_semantics=("parallel", "parallel"),
            vmem_limit_bytes=_VMEM_LIMIT),
        cost_estimate=cost,
    )(a, w_chunks, scale.astype(jnp.float32), bias.astype(jnp.float32))
    return out[:m]


@jax.jit
def max_over_window(p):
    m, _, c = p.shape
    tm = 512 if m >= 512 else _round_up(max(m, 1), 8)
    mp = _round_up(m, tm)
    p = jnp.pad(p, ((0, mp - m), (0, 0), (0, 0)))
    out = pl.pallas_call(
        _max9_kernel,
        out_shape=jax.ShapeDtypeStruct((mp, c), p.dtype),
        grid=(mp // tm,),
        in_specs=[pl.BlockSpec((tm, 9, c), lambda i: (i, 0, 0))],
        out_specs=pl.BlockSpec((tm, c), lambda i: (i, 0)),
        compiler_params=pltpu.CompilerParams(
            dimension_semantics=("parallel",),
            vmem_limit_bytes=_VMEM_LIMIT),
    )(p)
    return out[:m]


@jax.jit
def avgpool_fc(x, w, b):
    n = x.shape[0]
    nc = w.shape[1]
    return pl.pallas_call(
        _avgpool_fc_kernel,
        out_shape=jax.ShapeDtypeStruct((n, nc), jnp.float32),
        in_specs=[_VMEM] * 3,
        out_specs=_VMEM,
        compiler_params=pltpu.CompilerParams(vmem_limit_bytes=_VMEM_LIMIT),
    )(x.astype(jnp.bfloat16), w.astype(jnp.bfloat16),
      b.reshape(1, nc).astype(jnp.float32))


# ------------------------------- JAX glue -----------------------------------

def _extract_patches(x, kh, kw, stride, pad, pad_value=0.0):
    """x: (N, H, W, C) -> (N, Ho, Wo, kh, kw, C)."""
    n, h, w, c = x.shape
    xp = jnp.pad(x, ((0, 0), (pad, pad), (pad, pad), (0, 0)),
                 constant_values=pad_value)
    ho = (h + 2 * pad - kh) // stride + 1
    wo = (w + 2 * pad - kw) // stride + 1
    rows = []
    for dy in range(kh):
        cols = []
        for dx in range(kw):
            cols.append(xp[:, dy:dy + stride * (ho - 1) + 1:stride,
                           dx:dx + stride * (wo - 1) + 1:stride, :])
        rows.append(jnp.stack(cols, axis=3))           # (N, Ho, Wo, kw, C)
    return jnp.stack(rows, axis=3), ho, wo             # (N, Ho, Wo, kh, kw, C)


def conv1x1_bn(x, w, scale, bias, stride=1, relu=True):
    n, h, wd, c = x.shape
    if stride > 1:
        x = x[:, ::stride, ::stride, :]
        h, wd = x.shape[1], x.shape[2]
    cout = w.shape[1]
    y = matmul_bn(x.reshape(n * h * wd, c), w, scale, bias, relu=relu)
    return y.reshape(n, h, wd, cout)


def conv1x1_bn_add_relu(x, w, scale, bias, identity):
    n, h, wd, c = x.shape
    cout = w.shape[1]
    y = matmul_bn_res_relu(x.reshape(n * h * wd, c), w, scale, bias,
                           identity.reshape(n * h * wd, cout))
    return y.reshape(n, h, wd, cout)


def conv3x3_grouped_bn_relu(x, w_chunks, scale, bias, stride):
    n = x.shape[0]
    width = x.shape[3]
    patches, ho, wo = _extract_patches(x.astype(jnp.bfloat16), 3, 3, stride, 1)
    p = patches.reshape(n * ho * wo, 9, width)
    y = grouped_conv_mm(p, w_chunks, scale, bias)
    return y.reshape(n, ho, wo, width)


def stem_conv_bn_relu(x, w, scale, bias):
    n = x.shape[0]
    patches, ho, wo = _extract_patches(x.astype(jnp.bfloat16), 7, 7, 2, 3)
    a = patches.reshape(n * ho * wo, 7 * 7 * x.shape[3])
    y = matmul_bn(a, w, scale, bias, relu=True)
    return y.reshape(n, ho, wo, w.shape[1])


def maxpool3x3s2(x):
    n, _, _, c = x.shape
    patches, ho, wo = _extract_patches(x, 3, 3, 2, 1, pad_value=-1e30)
    p = patches.reshape(n * ho * wo, 9, c)
    return max_over_window(p).reshape(n, ho, wo, c)


# ------------------------------ parameters ----------------------------------

def _he(key, shape, fan_in):
    return jnp.sqrt(2.0 / fan_in) * jax.random.normal(key, shape, jnp.float32)


def _bn_fold(key, c, gamma_scale=1.0):
    k1, k2, k3 = jax.random.split(key, 3)
    gamma = gamma_scale * (1.0 + 0.01 * jax.random.normal(k1, (c,), jnp.float32))
    beta = 0.01 * jax.random.normal(k2, (c,), jnp.float32)
    mean = 0.01 * jax.random.normal(k3, (c,), jnp.float32)
    var = jnp.ones((c,), jnp.float32)
    scale = gamma / jnp.sqrt(var + 1e-5)
    bias = beta - mean * scale
    return scale, bias


def init_params(key, num_classes=100):
    cnt = [0]

    def nk():
        cnt[0] += 1
        return jax.random.fold_in(key, cnt[0])

    params = {"stem_w": _he(nk(), (7 * 7 * 3, 64), 7 * 7 * 3).astype(jnp.bfloat16)}
    params["stem_s"], params["stem_b"] = _bn_fold(nk(), 64)

    inplanes = 64
    layers = []
    for planes, nblocks, stride in zip(PLANES, BLOCKS, STRIDES):
        width = int(planes * (BASE_WIDTH / 64.0)) * GROUPS
        outplanes = planes * EXPANSION
        cg = width // GROUPS
        gm = CHUNK // cg            # groups merged per lane-dense chunk
        n_chunks = width // CHUNK
        blocks = []
        for bi in range(nblocks):
            s = stride if bi == 0 else 1
            blk = {"stride": s}
            blk["w1"] = _he(nk(), (inplanes, width), inplanes).astype(jnp.bfloat16)
            blk["s1"], blk["b1"] = _bn_fold(nk(), width)
            # grouped 3x3 weights -> block-diagonal 128-wide chunks (9,128,128)
            wg = _he(nk(), (n_chunks, gm, 9, cg, cg), 9 * cg)
            big = jnp.einsum("cjtab,jk->ctjakb", wg,
                             jnp.eye(gm, dtype=jnp.float32))
            blk["w2"] = big.reshape(n_chunks * 9, CHUNK, CHUNK).astype(jnp.bfloat16)
            s2, b2 = _bn_fold(nk(), width)
            blk["s2"] = s2.reshape(1, width)
            blk["b2"] = b2.reshape(1, width)
            blk["w3"] = _he(nk(), (width, outplanes), width).astype(jnp.bfloat16)
            # small gamma on the last BN keeps the 33-block residual stack tame
            blk["s3"], blk["b3"] = _bn_fold(nk(), outplanes, gamma_scale=0.1)
            if s != 1 or inplanes != outplanes:
                blk["wd"] = _he(nk(), (inplanes, outplanes),
                                inplanes).astype(jnp.bfloat16)
                blk["sd"], blk["bd"] = _bn_fold(nk(), outplanes)
            blocks.append(blk)
            inplanes = outplanes
        layers.append(blocks)
    params["layers"] = layers

    ncls_pad = _round_up(num_classes, 128)   # lane-dense FC head
    fc_w = 0.02 * jax.random.normal(nk(), (inplanes, num_classes), jnp.float32)
    params["fc_w"] = jnp.pad(fc_w, ((0, 0), (0, ncls_pad - num_classes))
                             ).astype(jnp.bfloat16)
    params["fc_b"] = jnp.zeros((ncls_pad,), jnp.float32)
    params["num_classes"] = num_classes
    return params


# -------------------------------- forward -----------------------------------

def bottleneck(x, blk):
    identity = x
    out = conv1x1_bn(x, blk["w1"], blk["s1"], blk["b1"], relu=True)
    out = conv3x3_grouped_bn_relu(out, blk["w2"], blk["s2"], blk["b2"],
                                  blk["stride"])
    if "wd" in blk:
        identity = conv1x1_bn(x, blk["wd"], blk["sd"], blk["bd"],
                              stride=blk["stride"], relu=False)
    return conv1x1_bn_add_relu(out, blk["w3"], blk["s3"], blk["b3"], identity)


def resnext101_forward(params, x_nchw):
    x = jnp.transpose(x_nchw, (0, 2, 3, 1)).astype(jnp.float32)  # NCHW -> NHWC
    x = stem_conv_bn_relu(x, params["stem_w"], params["stem_s"],
                          params["stem_b"])
    x = maxpool3x3s2(x)
    for blocks in params["layers"]:
        for blk in blocks:
            x = bottleneck(x, blk)
    n, h, w, c = x.shape
    logits = avgpool_fc(x.reshape(n, h * w, c), params["fc_w"], params["fc_b"])
    return logits[:, :params["num_classes"]]


if __name__ == "__main__":
    root = jax.random.PRNGKey(0)
    params = init_params(jax.random.fold_in(root, 1), num_classes=100)
    x = jax.random.normal(jax.random.fold_in(root, 2), (2, 3, 32, 32),
                          jnp.float32)
    logits = resnext101_forward(params, x)
    logits = jax.block_until_ready(logits)
    assert logits.shape == (2, 100)
    assert bool(jnp.all(jnp.isfinite(logits)))
    print("KERNEL_OK")
</pallas_src>

<mosaic_0001>
module attributes {stable_mosaic.version = 11 : i64} {
  func.func @_mm_bn_kernel(%arg0: i32, %arg1: i32, %arg2: memref<256x256xbf16, #tpu.memory_space<vmem>>, %arg3: memref<256x64xbf16, #tpu.memory_space<vmem>>, %arg4: memref<1x64xf32, #tpu.memory_space<vmem>>, %arg5: memref<1x64xf32, #tpu.memory_space<vmem>>, %arg6: memref<256x64xbf16, #tpu.memory_space<vmem>>, %arg7: memref<256x64xf32, #tpu.memory_space<vmem>>) attributes {dimension_semantics = [#tpu.dimension_semantics<parallel>, #tpu.dimension_semantics<arbitrary>], iteration_bounds = array<i64: 2, 1>, scalar_prefetch = 0 : i64, scratch_operands = 1 : i64, tpu.core_type = #tpu.core_type<tc>, window_params = [{transform_indices = @transform_0, window_bounds = array<i64: 256, 256>}, {transform_indices = @transform_1, window_bounds = array<i64: 256, 64>}, {pipeline_mode = #tpu.pipeline_mode<synchronous>, transform_indices = @transform_2, window_bounds = array<i64: 1, 64>}, {pipeline_mode = #tpu.pipeline_mode<synchronous>, transform_indices = @transform_3, window_bounds = array<i64: 1, 64>}, {transform_indices = @transform_4, window_bounds = array<i64: 256, 64>}]} {
    %c0_i32 = arith.constant 0 : i32
    %0 = arith.cmpi eq, %arg1, %c0_i32 : i32
    %1 = arith.extui %0 : i1 to i32
    %c0_i32_0 = arith.constant 0 : i32
    %2 = arith.cmpi ne, %1, %c0_i32_0 : i32
    scf.if %2 {
      %cst_10 = arith.constant 0.000000e+00 : f32
      %12 = vector.broadcast %cst_10 : f32 to vector<256x64xf32>
      %c0_11 = arith.constant 0 : index
      %c0_12 = arith.constant 0 : index
      %13 = vector.load %arg7[%c0_11, %c0_12] : memref<256x64xf32, #tpu.memory_space<vmem>>, vector<256x64xf32>
      tpu.vector_store %arg7[%c0_11, %c0_12], %12 {strides = array<i32>} : memref<256x64xf32, #tpu.memory_space<vmem>>, vector<256x64xf32>,
    } else {
    }
    %c0 = arith.constant 0 : index
    %c0_1 = arith.constant 0 : index
    %3 = vector.load %arg7[%c0, %c0_1] : memref<256x64xf32, #tpu.memory_space<vmem>>, vector<256x64xf32>
    %c0_2 = arith.constant 0 : index
    %c0_3 = arith.constant 0 : index
    %4 = vector.load %arg2[%c0_2, %c0_3] : memref<256x256xbf16, #tpu.memory_space<vmem>>, vector<256x256xbf16>
    %c0_4 = arith.constant 0 : index
    %c0_5 = arith.constant 0 : index
    %5 = vector.load %arg3[%c0_4, %c0_5] : memref<256x64xbf16, #tpu.memory_space<vmem>>, vector<256x64xbf16>
    %cst = arith.constant dense<0.000000e+00> : vector<256x64xf32>
    %6 = tpu.matmul %4, %5, %cst {dimension_numbers = #tpu.dot_dimension_numbers<[1], [0], [0], [1], [0, 0, 1, 1], [], []>} : vector<256x256xbf16>, vector<256x64xbf16>, vector<256x64xf32> -> vector<256x64xf32>
    %7 = arith.addf %3, %6 : vector<256x64xf32>
    %c0_6 = arith.constant 0 : index
    %c0_7 = arith.constant 0 : index
    %8 = vector.load %arg7[%c0_6, %c0_7] : memref<256x64xf32, #tpu.memory_space<vmem>>, vector<256x64xf32>
    tpu.vector_store %arg7[%c0_6, %c0_7], %7 {strides = array<i32>} : memref<256x64xf32, #tpu.memory_space<vmem>>, vector<256x64xf32>,
    %c0_i32_8 = arith.constant 0 : i32
    %9 = arith.cmpi eq, %arg1, %c0_i32_8 : i32
    %10 = arith.extui %9 : i1 to i32
    %c0_i32_9 = arith.constant 0 : i32
    %11 = arith.cmpi ne, %10, %c0_i32_9 : i32
    scf.if %11 {
      %c0_10 = arith.constant 0 : index
      %c0_11 = arith.constant 0 : index
      %12 = vector.load %arg7[%c0_10, %c0_11] : memref<256x64xf32, #tpu.memory_space<vmem>>, vector<256x64xf32>
      %c0_12 = arith.constant 0 : index
      %c0_13 = arith.constant 0 : index
      %13 = vector.load %arg4[%c0_12, %c0_13] : memref<1x64xf32, #tpu.memory_space<vmem>>, vector<1x64xf32>
      %14 = vector.broadcast %13 : vector<1x64xf32> to vector<256x64xf32>
      %15 = arith.mulf %12, %14 : vector<256x64xf32>
      %c0_14 = arith.constant 0 : index
      %c0_15 = arith.constant 0 : index
      %16 = vector.load %arg5[%c0_14, %c0_15] : memref<1x64xf32, #tpu.memory_space<vmem>>, vector<1x64xf32>
      %17 = vector.broadcast %16 : vector<1x64xf32> to vector<256x64xf32>
      %18 = arith.addf %15, %17 : vector<256x64xf32>
      %cst_16 = arith.constant 0.000000e+00 : f32
      %19 = vector.broadcast %cst_16 : f32 to vector<256x64xf32>
      %20 = arith.maximumf %18, %19 : vector<256x64xf32>
      %21 = arith.truncf %20 : vector<256x64xf32> to vector<256x64xbf16>
      %c0_17 = arith.constant 0 : index
      %c0_18 = arith.constant 0 : index
      %22 = vector.load %arg6[%c0_17, %c0_18] : memref<256x64xbf16, #tpu.memory_space<vmem>>, vector<256x64xbf16>
      tpu.vector_store %arg6[%c0_17, %c0_18], %21 {strides = array<i32>} : memref<256x64xbf16, #tpu.memory_space<vmem>>, vector<256x64xbf16>,
    } else {
    }
    return
  }
  func.func @transform_0(%arg0: i32, %arg1: i32) -> (i32, i32) {
    %c0_i32 = arith.constant 0 : i32
    return %arg0, %arg1 : i32, i32
  }
  func.func @transform_1(%arg0: i32, %arg1: i32) -> (i32, i32) {
    %c0_i32 = arith.constant 0 : i32
    %c0_i32_0 = arith.constant 0 : i32
    return %arg1, %c0_i32 : i32, i32
  }
  func.func @transform_2(%arg0: i32, %arg1: i32) -> (i32, i32) {
    %c0_i32 = arith.constant 0 : i32
    %c0_i32_0 = arith.constant 0 : i32
    %c0_i32_1 = arith.constant 0 : i32
    return %c0_i32, %c0_i32_0 : i32, i32
  }
  func.func @transform_3(%arg0: i32, %arg1: i32) -> (i32, i32) {
    %c0_i32 = arith.constant 0 : i32
    %c0_i32_0 = arith.constant 0 : i32
    %c0_i32_1 = arith.constant 0 : i32
    return %c0_i32, %c0_i32_0 : i32, i32
  }
  func.func @transform_4(%arg0: i32, %arg1: i32) -> (i32, i32) {
    %c0_i32 = arith.constant 0 : i32
    %c0_i32_0 = arith.constant 0 : i32
    return %arg0, %c0_i32 : i32, i32
  }
}

</mosaic_0001>

<llo_original>
// kernel: matmul_bn.1
$region0: #{matmul_bn.1}
  #allocation0 [shape = 'u32[]', space=smem, size = 0x4, offset = 0x4, fixed_abs, tag = 'smem constant byte address 0x4 - core index']
  #allocation1 [shape = 'u32[144,128]{1,0:T(1,128)}', space=vmem, size = 0x12000, scoped, tag = 'internal scratch']
  #allocation2 [shape = 'f32[256,64]{1,0:T(8,128)}', space=vmem, size = 0x20000, scoped, tag = 'scratch operand']
  %s0 = inlined_call_operand.vmem [shape: bf16[512,256], index: 0, kind: input, shape index: {}]
  %s1 = inlined_call_operand.vmem [shape: bf16[256,64], index: 1, kind: input, shape index: {}]
  %s2 = inlined_call_operand.vmem [shape: f32[1,64], index: 2, kind: input, shape index: {}]
  %s3 = inlined_call_operand.vmem [shape: f32[1,64], index: 3, kind: input, shape index: {}]
  %s4 = inlined_call_operand.vmem [shape: bf16[512,64], index: 4, kind: output, shape index: {}]
  %s5 = sld [smem:[#allocation0]]
  $region57: #{matmul_bn.1} parent=0
    _
  %s7 = ssub.s32 1, %s5
  %s8 = scalar_select 0, %s7, %s5
  loop: start=0, step=1, limit=4
  $region2: #{matmul_bn.1} parent=0 // loop_pre_header
    _
  $region3: #{matmul_bn.1} parent=0 // loop_header
    %s10 = sphi 0, %s14
    %p11 = scmp.ge.s32.totalorder %s10, 4
    %s17 = sphi 0, %s29
    %s18 = sphi 0, %s25
    %s19 = sphi 0, %s17
    %s20 = sphi 0, %s18
    %s21 = sphi 0, %s19
    %s22 = sphi 0, %s20
    %s34 = sphi 0, %s36
    %s37 = sphi 0, %s34
    %s38 = sphi 0, %s37
    %s54 = sphi 0, %s38
    %s60 = sphi 0, %s62
    %s63 = sphi 0, %s60
    %s64 = sphi 0, %s63
    %s80 = sphi 0, %s64
    %s84 = sphi 0, %s84
    %s86 = sphi 0, %s84
    %s87 = sphi 0, %s86
    %s101 = sphi 0, %s87
    %s105 = sphi 0, %s105
    %s107 = sphi 0, %s105
    %s108 = sphi 0, %s107
    %s122 = sphi 0, %s108
    %s128 = sphi 0, %s130
    %s131 = sphi 0, %s128
    %s132 = sphi 0, %s131
    %s148 = sphi 0, %s132
  $region4: #{matmul_bn.1} parent=0 // loop_header_branch
    %13 = sbr.rel (%p11) target = $region8
  $region5: #{matmul_bn.1} parent=0 // loop_body
    %s15 = ssub.s32 %s10, 1
    %s16 = ssub.s32 %s10, 2
    %s23 = sadd.s32 1, %s18
    %p24 = scmp.ge.s32.totalorder %s23, 1
    %s25 = scalar_select %p24, 0, %s23
    %s26 = sadd.s32 1, %s17
    %s27 = scalar_select %p24, %s26, %s17
    %p28 = scmp.ge.s32.totalorder %s27, 2
    %s29 = scalar_select %p28, 0, %s27
    %s30 = ssub.s32 %s17, %s29
    %s31 = ssub.s32 %s18, %s25
    %s32 = sor.u32 %s30, %s31
    %p33 = scmp.eq.s32.totalorder %s32, 0
    %s35 = sadd.s32 %s34, 1
    %s36 = scalar_select %p33, %s34, %s35
    %p39 = pneg %p33
    %p40 = scmp.eq.s32.totalorder %s10, 1
    %p41 = por %p39, %p40
    %p42 = scmp.ne.s32.totalorder %s34, %s37
    %p43 = scmp.eq.s32.totalorder %s10, 0
    %p44 = por %p42, %p43
    %p45 = scmp.ne.s32.totalorder %s34, %s37
    %p46 = scmp.eq.s32.totalorder %s15, 1
    %p47 = por %p45, %p46
    %p48 = scmp.ne.s32.totalorder %s37, %s38
    %p49 = scmp.eq.s32.totalorder %s15, 0
    %p50 = por %p48, %p49
    %p51 = scmp.ne.s32.totalorder %s37, %s38
    %p52 = scmp.eq.s32.totalorder %s16, 1
    %p53 = por %p51, %p52
    %p55 = scmp.ne.s32.totalorder %s38, %s54
    %p56 = scmp.eq.s32.totalorder %s16, 0
    %p57 = por %p55, %p56
    %s58 = ssub.s32 %s18, %s25
    %p59 = scmp.eq.s32.totalorder %s58, 0
    %s61 = sadd.s32 %s60, 1
    %s62 = scalar_select %p59, %s60, %s61
    %p65 = pneg %p59
    %p66 = scmp.eq.s32.totalorder %s10, 1
    %p67 = por %p65, %p66
    %p68 = scmp.ne.s32.totalorder %s60, %s63
    %p69 = scmp.eq.s32.totalorder %s10, 0
    %p70 = por %p68, %p69
    %p71 = scmp.ne.s32.totalorder %s60, %s63
    %p72 = scmp.eq.s32.totalorder %s15, 1
    %p73 = por %p71, %p72
    %p74 = scmp.ne.s32.totalorder %s63, %s64
    %p75 = scmp.eq.s32.totalorder %s15, 0
    %p76 = por %p74, %p75
    %p77 = scmp.ne.s32.totalorder %s63, %s64
    %p78 = scmp.eq.s32.totalorder %s16, 1
    %p79 = por %p77, %p78
    %p81 = scmp.ne.s32.totalorder %s64, %s80
    %p82 = scmp.eq.s32.totalorder %s16, 0
    %p83 = por %p81, %p82
    %s85 = sadd.s32 %s84, 1
    %p88 = scmp.eq.s32.totalorder %s10, 1
    %p89 = scmp.ne.s32.totalorder %s84, %s86
    %p90 = scmp.eq.s32.totalorder %s10, 0
    %p91 = por %p89, %p90
    %p92 = scmp.ne.s32.totalorder %s84, %s86
    %p93 = scmp.eq.s32.totalorder %s15, 1
    %p94 = por %p92, %p93
    %p95 = scmp.ne.s32.totalorder %s86, %s87
    %p96 = scmp.eq.s32.totalorder %s15, 0
    %p97 = por %p95, %p96
    %p98 = scmp.ne.s32.totalorder %s86, %s87
    %p99 = scmp.eq.s32.totalorder %s16, 1
    %p100 = por %p98, %p99
    %p102 = scmp.ne.s32.totalorder %s87, %s101
    %p103 = scmp.eq.s32.totalorder %s16, 0
    %p104 = por %p102, %p103
    %s106 = sadd.s32 %s105, 1
    %p109 = scmp.eq.s32.totalorder %s10, 1
    %p110 = scmp.ne.s32.totalorder %s105, %s107
    %p111 = scmp.eq.s32.totalorder %s10, 0
    %p112 = por %p110, %p111
    %p113 = scmp.ne.s32.totalorder %s105, %s107
    %p114 = scmp.eq.s32.totalorder %s15, 1
    %p115 = por %p113, %p114
    %p116 = scmp.ne.s32.totalorder %s107, %s108
    %p117 = scmp.eq.s32.totalorder %s15, 0
    %p118 = por %p116, %p117
    %p119 = scmp.ne.s32.totalorder %s107, %s108
    %p120 = scmp.eq.s32.totalorder %s16, 1
    %p121 = por %p119, %p120
    %p123 = scmp.ne.s32.totalorder %s108, %s122
    %p124 = scmp.eq.s32.totalorder %s16, 0
    %p125 = por %p123, %p124
    %s126 = ssub.s32 %s17, %s29
    %p127 = scmp.eq.s32.totalorder %s126, 0
    %s129 = sadd.s32 %s128, 1
    %s130 = scalar_select %p127, %s128, %s129
    %p133 = pneg %p127
    %p134 = scmp.eq.s32.totalorder %s10, 1
    %p135 = por %p133, %p134
    %p136 = scmp.ne.s32.totalorder %s128, %s131
    %p137 = scmp.eq.s32.totalorder %s10, 0
    %p138 = por %p136, %p137
    %p139 = scmp.ne.s32.totalorder %s128, %s131
    %p140 = scmp.eq.s32.totalorder %s15, 1
    %p141 = por %p139, %p140
    %p142 = scmp.ne.s32.totalorder %s131, %s132
    %p143 = scmp.eq.s32.totalorder %s15, 0
    %p144 = por %p142, %p143
    %p145 = scmp.ne.s32.totalorder %s131, %s132
    %p146 = scmp.eq.s32.totalorder %s16, 1
    %p147 = por %p145, %p146
    %p149 = scmp.ne.s32.totalorder %s132, %s148
    %p150 = scmp.eq.s32.totalorder %s16, 0
    %p151 = por %p149, %p150
    %p152 = scmp.le.s32.totalorder 1, %s10
    %p153 = scmp.lt.s32.totalorder %s10, 3
    %p154 = pnand %p152, %p153
    %p155 = pneg %p154
    // Predicated region
    $region9: #{matmul_bn.1} parent=5 // pred_check
      _
    $region10: #{matmul_bn.1} parent=5 // pred_check_branch
      %157 = sbr.rel (%p154) target = $region12
    $region11: #{matmul_bn.1} parent=5 // pred_region
      %s158 = ssub.s32 %s10, 1
      // Predicated region
      $region13: #{matmul_bn.1} parent=11 // pred_check
        %p159 = pneg %p76
      $region14: #{matmul_bn.1} parent=11 // pred_check_branch
        %161 = sbr.rel (%p159) target = $region16
      $region15: #{matmul_bn.1} parent=11 // pred_region
        %s162 = smul.u32 32, %s20
        %p163 = scmp.lt.s32.totalorder %s162, 31
        %s164 = scalar_select %p163, %s162, 31
        %s165 = smul.addr %s164, 4
        %s166 = scalar_lea.vmem %s1, %s165
        %s167 = smul.u32 32, %s20
      $region16: #{matmul_bn.1} parent=11 // pred_fallthru
        _
      // Predicated region
      $region17: #{matmul_bn.1} parent=11 // pred_check
        %p168 = pneg %p97
      $region18: #{matmul_bn.1} parent=11 // pred_check_branch
        %170 = sbr.rel (%p168) target = $region20
      $region19: #{matmul_bn.1} parent=11 // pred_region
        _
      $region20: #{matmul_bn.1} parent=11 // pred_fallthru
        _
      // Predicated region
      $region21: #{matmul_bn.1} parent=11 // pred_check
        %p171 = pneg %p118
      $region22: #{matmul_bn.1} parent=11 // pred_check_branch
        %173 = sbr.rel (%p171) target = $region24
      $region23: #{matmul_bn.1} parent=11 // pred_region
        _
      $region24: #{matmul_bn.1} parent=11 // pred_fallthru
        _
    $region12: #{matmul_bn.1} parent=5 // pred_fallthru
      _
    %p174 = scmp.lt.s32.totalorder %s10, 2
    // Predicated region
    $region25: #{matmul_bn.1} parent=5 // pred_check
      %p175 = pneg %p174
    $region26: #{matmul_bn.1} parent=5 // pred_check_branch
      %177 = sbr.rel (%p175) target = $region28
    $region27: #{matmul_bn.1} parent=5 // pred_region
      // Predicated region
      $region29: #{matmul_bn.1} parent=27 // pred_check
        %p178 = pneg %p44
      $region30: #{matmul_bn.1} parent=27 // pred_check_branch
        %180 = sbr.rel (%p178) target = $region32
      $region31: #{matmul_bn.1} parent=27 // pred_region
        %s181 = smul.u32 32, %s17
        %s182 = smul.u32 2, %s18
        %p183 = scmp.lt.s32.totalorder %s181, 63
        %s184 = scalar_select %p183, %s181, 63
        %p185 = scmp.lt.s32.totalorder %s182, 1
        %s186 = scalar_select %p185, %s182, 1
        %s187 = smul.addr %s184, 2
        %s188 = sadd.s32 %s186, %s187
        %s189 = smul.addr %s188, 4
        %s190 = scalar_lea.vmem %s0, %s189
        %s191 = smul.u32 32, %s17
        %s192 = smul.u32 2, %s18
      $region32: #{matmul_bn.1} parent=27 // pred_fallthru
        _
    $region28: #{matmul_bn.1} parent=5 // pred_fallthru
      _
    %p193 = scmp.le.s32.totalorder 1, %s10
    %p194 = scmp.lt.s32.totalorder %s10, 3
    %p195 = pnand %p193, %p194
    %p196 = pneg %p195
    // Predicated region
    $region33: #{matmul_bn.1} parent=5 // pred_check
      _
    $region34: #{matmul_bn.1} parent=5 // pred_check_branch
      %198 = sbr.rel (%p195) target = $region36
    $region35: #{matmul_bn.1} parent=5 // pred_region
      %s199 = ssub.s32 %s10, 1
      %s200 = smul.u32 32, %s19
      %s201 = smul.u32 2, %s20
      %p202 = scmp.lt.s32.totalorder %s200, 63
      %s203 = scalar_select %p202, %s200, 63
      %p204 = scmp.lt.s32.totalorder %s201, 1
      %s205 = scalar_select %p204, %s201, 1
      %s206 = smul.addr %s203, 2
      %s207 = sadd.s32 %s205, %s206
      %s208 = smul.addr %s207, 4
      %s209 = scalar_lea.vmem %s0, %s208
      %p210 = pneg %p50
      %p211 = pneg %p47
      %s212 = smul.u32 32, %s20
      %p213 = scmp.lt.s32.totalorder %s212, 31
      %s214 = scalar_select %p213, %s212, 31
      %s215 = smul.addr %s214, 4
      %s216 = scalar_lea.vmem %s1, %s215
      %p217 = pneg %p76
      %p218 = pneg %p73
      %p219 = pneg %p97
      %p220 = pneg %p94
      %p221 = pneg %p118
      %p222 = pneg %p115
      %p223 = pneg %p144
      %p224 = pneg %p141
      %s225 = smul.u32 32, %s19
      %p226 = scmp.lt.s32.totalorder %s225, 63
      %s227 = scalar_select %p226, %s225, 63
      %s228 = smul.addr %s227, 4
      %s229 = scalar_lea.vmem %s4, %s228
      %s230 = smul.u32 32, %s19
      %s231 = smul.u32 2, %s20
      %p232 = scmp.lt.s32.totalorder %s230, 63
      %s233 = scalar_select %p232, %s230, 63
      %p234 = scmp.lt.s32.totalorder %s231, 1
      %s235 = scalar_select %p234, %s231, 1
      %s236 = smul.addr %s233, 2
      %s237 = sadd.s32 %s235, %s236
      %s238 = smul.addr %s237, 4
      %s239 = scalar_lea.vmem %s0, %s238
      %s240 = smul.u32 32, %s19
      %s241 = smul.u32 2, %s20
      %s242 = smul.u32 32, %s20
      %p243 = scmp.lt.s32.totalorder %s242, 31
      %s244 = scalar_select %p243, %s242, 31
      %s245 = smul.addr %s244, 4
      %s246 = scalar_lea.vmem %s1, %s245
      %s247 = smul.u32 32, %s20
      %s248 = smul.u32 32, %s19
      %p249 = scmp.lt.s32.totalorder %s248, 63
      %s250 = scalar_select %p249, %s248, 63
      %s251 = smul.addr %s250, 4
      %s252 = scalar_lea.vmem %s4, %s251
      %s253 = smul.u32 32, %s19
      %p255 = scmp.eq.s32.totalorder %s20, 0
      // Predicated region
      $region37: #{matmul_bn.1} parent=35 // pred_check
        %p256 = pneg %p255
      $region38: #{matmul_bn.1} parent=35 // pred_check_branch
        %258 = sbr.rel (%p256) target = $region40
      $region39: #{matmul_bn.1} parent=35 // pred_region
        %vm259 = vcmask 523264
        %260 = vst.msk [vmem:[#allocation2] sm:$0xff] %vm259, 0.0
        %261 = vst.msk [vmem:[#allocation2 + $0x8] sm:$0xff] %vm259, 0.0
        %262 = vst.msk [vmem:[#allocation2 + $0x10] sm:$0xff] %vm259, 0.0
        %263 = vst.msk [vmem:[#allocation2 + $0x18] sm:$0xff] %vm259, 0.0
        %264 = vst.msk [vmem:[#allocation2 + $0x20] sm:$0xff] %vm259, 0.0
        %265 = vst.msk [vmem:[#allocation2 + $0x28] sm:$0xff] %vm259, 0.0
        %266 = vst.msk [vmem:[#allocation2 + $0x30] sm:$0xff] %vm259, 0.0
        %267 = vst.msk [vmem:[#allocation2 + $0x38] sm:$0xff] %vm259, 0.0
        %268 = vst.msk [vmem:[#allocation2 + $0x40] sm:$0xff] %vm259, 0.0
        %269 = vst.msk [vmem:[#allocation2 + $0x48] sm:$0xff] %vm259, 0.0
        %270 = vst.msk [vmem:[#allocation2 + $0x50] sm:$0xff] %vm259, 0.0
        %271 = vst.msk [vmem:[#allocation2 + $0x58] sm:$0xff] %vm259, 0.0
        %272 = vst.msk [vmem:[#allocation2 + $0x60] sm:$0xff] %vm259, 0.0
        %273 = vst.msk [vmem:[#allocation2 + $0x68] sm:$0xff] %vm259, 0.0
        %274 = vst.msk [vmem:[#allocation2 + $0x70] sm:$0xff] %vm259, 0.0
        %275 = vst.msk [vmem:[#allocation2 + $0x78] sm:$0xff] %vm259, 0.0
        %276 = vst.msk [vmem:[#allocation2 + $0x80] sm:$0xff] %vm259, 0.0
        %277 = vst.msk [vmem:[#allocation2 + $0x88] sm:$0xff] %vm259, 0.0
        %278 = vst.msk [vmem:[#allocation2 + $0x90] sm:$0xff] %vm259, 0.0
        %279 = vst.msk [vmem:[#allocation2 + $0x98] sm:$0xff] %vm259, 0.0
        %280 = vst.msk [vmem:[#allocation2 + $0xa0] sm:$0xff] %vm259, 0.0
        %281 = vst.msk [vmem:[#allocation2 + $0xa8] sm:$0xff] %vm259, 0.0
        %282 = vst.msk [vmem:[#allocation2 + $0xb0] sm:$0xff] %vm259, 0.0
        %283 = vst.msk [vmem:[#allocation2 + $0xb8] sm:$0xff] %vm259, 0.0
        %284 = vst.msk [vmem:[#allocation2 + $0xc0] sm:$0xff] %vm259, 0.0
        %285 = vst.msk [vmem:[#allocation2 + $0xc8] sm:$0xff] %vm259, 0.0
        %286 = vst.msk [vmem:[#allocation2 + $0xd0] sm:$0xff] %vm259, 0.0
        %287 = vst.msk [vmem:[#allocation2 + $0xd8] sm:$0xff] %vm259, 0.0
        %288 = vst.msk [vmem:[#allocation2 + $0xe0] sm:$0xff] %vm259, 0.0
        %289 = vst.msk [vmem:[#allocation2 + $0xe8] sm:$0xff] %vm259, 0.0
        %290 = vst.msk [vmem:[#allocation2 + $0xf0] sm:$0xff] %vm259, 0.0
        %291 = vst.msk [vmem:[#allocation2 + $0xf8] sm:$0xff] %vm259, 0.0
      $region40: #{matmul_bn.1} parent=35 // pred_fallthru
        _
      %v292 = vld [vmem:[#allocation2] sm:$0xff]
      %v293 = vld [vmem:[#allocation2 + $0x8] sm:$0xff]
      %v294 = vld [vmem:[#allocation2 + $0x10] sm:$0xff]
      %v295 = vld [vmem:[#allocation2 + $0x18] sm:$0xff]
      %v296 = vld [vmem:[#allocation2 + $0x20] sm:$0xff]
      %v297 = vld [vmem:[#allocation2 + $0x28] sm:$0xff]
      %v298 = vld [vmem:[#allocation2 + $0x30] sm:$0xff]
      %v299 = vld [vmem:[#allocation2 + $0x38] sm:$0xff]
      %v300 = vld [vmem:[#allocation2 + $0x40] sm:$0xff]
      %v301 = vld [vmem:[#allocation2 + $0x48] sm:$0xff]
      %v302 = vld [vmem:[#allocation2 + $0x50] sm:$0xff]
      %v303 = vld [vmem:[#allocation2 + $0x58] sm:$0xff]
      %v304 = vld [vmem:[#allocation2 + $0x60] sm:$0xff]
      %v305 = vld [vmem:[#allocation2 + $0x68] sm:$0xff]
      %v306 = vld [vmem:[#allocation2 + $0x70] sm:$0xff]
      %v307 = vld [vmem:[#allocation2 + $0x78] sm:$0xff]
      %v308 = vld [vmem:[#allocation2 + $0x80] sm:$0xff]
      %v309 = vld [vmem:[#allocation2 + $0x88] sm:$0xff]
      %v310 = vld [vmem:[#allocation2 + $0x90] sm:$0xff]
      %v311 = vld [vmem:[#allocation2 + $0x98] sm:$0xff]
      %v312 = vld [vmem:[#allocation2 + $0xa0] sm:$0xff]
      %v313 = vld [vmem:[#allocation2 + $0xa8] sm:$0xff]
      %v314 = vld [vmem:[#allocation2 + $0xb0] sm:$0xff]
      %v315 = vld [vmem:[#allocation2 + $0xb8] sm:$0xff]
      %v316 = vld [vmem:[#allocation2 + $0xc0] sm:$0xff]
      %v317 = vld [vmem:[#allocation2 + $0xc8] sm:$0xff]
      %v318 = vld [vmem:[#allocation2 + $0xd0] sm:$0xff]
      %v319 = vld [vmem:[#allocation2 + $0xd8] sm:$0xff]
      %v320 = vld [vmem:[#allocation2 + $0xe0] sm:$0xff]
      %v321 = vld [vmem:[#allocation2 + $0xe8] sm:$0xff]
      %v322 = vld [vmem:[#allocation2 + $0xf0] sm:$0xff]
      %v323 = vld [vmem:[#allocation2 + $0xf8] sm:$0xff]
      %v324 = vld [vmem:[%s239] sm:$0xff]
      %v325 = vld [vmem:[%s239 + $0x8] sm:$0xff]
      %v326 = vld [vmem:[%s239 + $0x10] sm:$0xff]
      %v327 = vld [vmem:[%s239 + $0x18] sm:$0xff]
      %v328 = vld [vmem:[%s239 + $0x20] sm:$0xff]
      %v329 = vld [vmem:[%s239 + $0x28] sm:$0xff]
      %v330 = vld [vmem:[%s239 + $0x30] sm:$0xff]
      %v331 = vld [vmem:[%s239 + $0x38] sm:$0xff]
      %v332 = vld [vmem:[%s239 + $0x40] sm:$0xff]
      %v333 = vld [vmem:[%s239 + $0x48] sm:$0xff]
      %v334 = vld [vmem:[%s239 + $0x50] sm:$0xff]
      %v335 = vld [vmem:[%s239 + $0x58] sm:$0xff]
      %v336 = vld [vmem:[%s239 + $0x60] sm:$0xff]
      %v337 = vld [vmem:[%s239 + $0x68] sm:$0xff]
      %v338 = vld [vmem:[%s239 + $0x70] sm:$0xff]
      %v339 = vld [vmem:[%s239 + $0x78] sm:$0xff]
      %v340 = vld [vmem:[%s239 + $0x80] sm:$0xff]
      %v341 = vld [vmem:[%s239 + $0x88] sm:$0xff]
      %v342 = vld [vmem:[%s239 + $0x90] sm:$0xff]
      %v343 = vld [vmem:[%s239 + $0x98] sm:$0xff]
      %v344 = vld [vmem:[%s239 + $0xa0] sm:$0xff]
      %v345 = vld [vmem:[%s239 + $0xa8] sm:$0xff]
      %v346 = vld [vmem:[%s239 + $0xb0] sm:$0xff]
      %v347 = vld [vmem:[%s239 + $0xb8] sm:$0xff]
      %v348 = vld [vmem:[%s239 + $0xc0] sm:$0xff]
      %v349 = vld [vmem:[%s239 + $0xc8] sm:$0xff]
      %v350 = vld [vmem:[%s239 + $0xd0] sm:$0xff]
      %v351 = vld [vmem:[%s239 + $0xd8] sm:$0xff]
      %v352 = vld [vmem:[%s239 + $0xe0] sm:$0xff]
      %v353 = vld [vmem:[%s239 + $0xe8] sm:$0xff]
      %v354 = vld [vmem:[%s239 + $0xf0] sm:$0xff]
      %v355 = vld [vmem:[%s239 + $0xf8] sm:$0xff]
      %v356 = vld [vmem:[%s246] sm:$0xf]
      %v357 = vld [vmem:[%s246 + $0x4] sm:$0xf]
      %v358 = vld [vmem:[%s246 + $0x8] sm:$0xf]
      %v359 = vld [vmem:[%s246 + $0xc] sm:$0xf]
      %v360 = vld [vmem:[%s246 + $0x10] sm:$0xf]
      %v361 = vld [vmem:[%s246 + $0x14] sm:$0xf]
      %v362 = vld [vmem:[%s246 + $0x18] sm:$0xf]
      %v363 = vld [vmem:[%s246 + $0x1c] sm:$0xf]
      %v364 = vld [vmem:[%s246 + $0x20] sm:$0xf]
      %v365 = vld [vmem:[%s246 + $0x24] sm:$0xf]
      %v366 = vld [vmem:[%s246 + $0x28] sm:$0xf]
      %v367 = vld [vmem:[%s246 + $0x2c] sm:$0xf]
      %v368 = vld [vmem:[%s246 + $0x30] sm:$0xf]
      %v369 = vld [vmem:[%s246 + $0x34] sm:$0xf]
      %v370 = vld [vmem:[%s246 + $0x38] sm:$0xf]
      %v371 = vld [vmem:[%s246 + $0x3c] sm:$0xf]
      %v372 = vld [vmem:[%s246 + $0x40] sm:$0xf]
      %v373 = vld [vmem:[%s246 + $0x44] sm:$0xf]
      %v374 = vld [vmem:[%s246 + $0x48] sm:$0xf]
      %v375 = vld [vmem:[%s246 + $0x4c] sm:$0xf]
      %v376 = vld [vmem:[%s246 + $0x50] sm:$0xf]
      %v377 = vld [vmem:[%s246 + $0x54] sm:$0xf]
      %v378 = vld [vmem:[%s246 + $0x58] sm:$0xf]
      %v379 = vld [vmem:[%s246 + $0x5c] sm:$0xf]
      %v380 = vld [vmem:[%s246 + $0x60] sm:$0xf]
      %v381 = vld [vmem:[%s246 + $0x64] sm:$0xf]
      %v382 = vld [vmem:[%s246 + $0x68] sm:$0xf]
      %v383 = vld [vmem:[%s246 + $0x6c] sm:$0xf]
      %v384 = vld [vmem:[%s246 + $0x70] sm:$0xf]
      %v385 = vld [vmem:[%s246 + $0x74] sm:$0xf]
      %v386 = vld [vmem:[%s246 + $0x78] sm:$0xf]
      %v387 = vld [vmem:[%s246 + $0x7c] sm:$0xf]
      %v420 = vunpack.c.l.b16 %v324
      %v421 = vunpack.c.h.b16 %v324
      %v422 = vunpack.c.l.b16 %v325
      %v423 = vunpack.c.h.b16 %v325
      %v424 = vunpack.c.l.b16 %v326
      %v425 = vunpack.c.h.b16 %v326
      %v426 = vunpack.c.l.b16 %v327
      %v427 = vunpack.c.h.b16 %v327
      %v428 = vunpack.c.l.b16 %v328
      %v429 = vunpack.c.h.b16 %v328
      %v430 = vunpack.c.l.b16 %v329
      %v431 = vunpack.c.h.b16 %v329
      %v432 = vunpack.c.l.b16 %v330
      %v433 = vunpack.c.h.b16 %v330
      %v434 = vunpack.c.l.b16 %v331
      %v435 = vunpack.c.h.b16 %v331
      %v436 = vunpack.c.l.b16 %v332
      %v437 = vunpack.c.h.b16 %v332
      %v438 = vunpack.c.l.b16 %v333
      %v439 = vunpack.c.h.b16 %v333
      %v440 = vunpack.c.l.b16 %v334
      %v441 = vunpack.c.h.b16 %v334
      %v442 = vunpack.c.l.b16 %v335
      %v443 = vunpack.c.h.b16 %v335
      %v444 = vunpack.c.l.b16 %v336
      %v445 = vunpack.c.h.b16 %v336
      %v446 = vunpack.c.l.b16 %v337
      %v447 = vunpack.c.h.b16 %v337
      %v448 = vunpack.c.l.b16 %v338
      %v449 = vunpack.c.h.b16 %v338
      %v450 = vunpack.c.l.b16 %v339
      %v451 = vunpack.c.h.b16 %v339
      %v452 = vunpack.c.l.b16 %v340
      %v453 = vunpack.c.h.b16 %v340
      %v454 = vunpack.c.l.b16 %v341
      %v455 = vunpack.c.h.b16 %v341
      %v456 = vunpack.c.l.b16 %v342
      %v457 = vunpack.c.h.b16 %v342
      %v458 = vunpack.c.l.b16 %v343
      %v459 = vunpack.c.h.b16 %v343
      %v460 = vunpack.c.l.b16 %v344
      %v461 = vunpack.c.h.b16 %v344
      %v462 = vunpack.c.l.b16 %v345
      %v463 = vunpack.c.h.b16 %v345
      %v464 = vunpack.c.l.b16 %v346
      %v465 = vunpack.c.h.b16 %v346
      %v466 = vunpack.c.l.b16 %v347
      %v467 = vunpack.c.h.b16 %v347
      %v468 = vunpack.c.l.b16 %v348
      %v469 = vunpack.c.h.b16 %v348
      %v470 = vunpack.c.l.b16 %v349
      %v471 = vunpack.c.h.b16 %v349
      %v472 = vunpack.c.l.b16 %v350
      %v473 = vunpack.c.h.b16 %v350
      %v474 = vunpack.c.l.b16 %v351
      %v475 = vunpack.c.h.b16 %v351
      %v476 = vunpack.c.l.b16 %v352
      %v477 = vunpack.c.h.b16 %v352
      %v478 = vunpack.c.l.b16 %v353
      %v479 = vunpack.c.h.b16 %v353
      %v480 = vunpack.c.l.b16 %v354
      %v481 = vunpack.c.h.b16 %v354
      %v482 = vunpack.c.l.b16 %v355
      %v483 = vunpack.c.h.b16 %v355
      %v484 = vpack.c.b16 %v422, %v420
      %v485 = vpack.c.b16 %v423, %v421
      %v486 = vpack.c.b16 %v426, %v424
      %v487 = vpack.c.b16 %v427, %v425
      %v488 = vpack.c.b16 %v430, %v428
      %v489 = vpack.c.b16 %v431, %v429
      %v490 = vpack.c.b16 %v434, %v432
      %v491 = vpack.c.b16 %v435, %v433
      %v492 = vpack.c.b16 %v438, %v436
      %v493 = vpack.c.b16 %v439, %v437
      %v494 = vpack.c.b16 %v442, %v440
      %v495 = vpack.c.b16 %v443, %v441
      %v496 = vpack.c.b16 %v446, %v444
      %v497 = vpack.c.b16 %v447, %v445
      %v498 = vpack.c.b16 %v450, %v448
      %v499 = vpack.c.b16 %v451, %v449
      %v500 = vpack.c.b16 %v454, %v452
      %v501 = vpack.c.b16 %v455, %v453
      %v502 = vpack.c.b16 %v458, %v456
      %v503 = vpack.c.b16 %v459, %v457
      %v504 = vpack.c.b16 %v462, %v460
      %v505 = vpack.c.b16 %v463, %v461
      %v506 = vpack.c.b16 %v466, %v464
      %v507 = vpack.c.b16 %v467, %v465
      %v508 = vpack.c.b16 %v470, %v468
      %v509 = vpack.c.b16 %v471, %v469
      %v510 = vpack.c.b16 %v474, %v472
      %v511 = vpack.c.b16 %v475, %v473
      %v512 = vpack.c.b16 %v478, %v476
      %v513 = vpack.c.b16 %v479, %v477
      %v514 = vpack.c.b16 %v482, %v480
      %v515 = vpack.c.b16 %v483, %v481
      %v580 = vunpack.c.l.b16 %v356
      %v581 = vunpack.c.l.b16 %v357
      %v582 = vunpack.c.l.b16 %v358
      %v583 = vunpack.c.l.b16 %v359
      %v584 = vunpack.c.l.b16 %v360
      %v585 = vunpack.c.l.b16 %v361
      %v586 = vunpack.c.l.b16 %v362
      %v587 = vunpack.c.l.b16 %v363
      %v588 = vunpack.c.l.b16 %v364
      %v589 = vunpack.c.l.b16 %v365
      %v590 = vunpack.c.l.b16 %v366
      %v591 = vunpack.c.l.b16 %v367
      %v592 = vunpack.c.l.b16 %v368
      %v593 = vunpack.c.l.b16 %v369
      %v594 = vunpack.c.l.b16 %v370
      %v595 = vunpack.c.l.b16 %v371
      %v596 = vunpack.c.l.b16 %v372
      %v597 = vunpack.c.l.b16 %v373
      %v598 = vunpack.c.l.b16 %v374
      %v599 = vunpack.c.l.b16 %v375
      %v600 = vunpack.c.l.b16 %v376
      %v601 = vunpack.c.l.b16 %v377
      %v602 = vunpack.c.l.b16 %v378
      %v603 = vunpack.c.l.b16 %v379
      %v604 = vunpack.c.l.b16 %v380
      %v605 = vunpack.c.l.b16 %v381
      %v606 = vunpack.c.l.b16 %v382
      %v607 = vunpack.c.l.b16 %v383
      %v608 = vunpack.c.l.b16 %v384
      %v609 = vunpack.c.l.b16 %v385
      %v610 = vunpack.c.l.b16 %v386
      %v611 = vunpack.c.l.b16 %v387
      %v612 = vpack.c.b16 %v581, %v580
      %v613 = vpack.c.b16 %v583, %v582
      %v614 = vpack.c.b16 %v585, %v584
      %v615 = vpack.c.b16 %v587, %v586
      %v616 = vpack.c.b16 %v589, %v588
      %v617 = vpack.c.b16 %v591, %v590
      %v618 = vpack.c.b16 %v593, %v592
      %v619 = vpack.c.b16 %v595, %v594
      %v620 = vpack.c.b16 %v597, %v596
      %v621 = vpack.c.b16 %v599, %v598
      %v622 = vpack.c.b16 %v601, %v600
      %v623 = vpack.c.b16 %v603, %v602
      %v624 = vpack.c.b16 %v605, %v604
      %v625 = vpack.c.b16 %v607, %v606
      %v626 = vpack.c.b16 %v609, %v608
      %v627 = vpack.c.b16 %v611, %v610
      %644 = vmatprep.subr.bf16.mxu0 0
      %645 = vmatpush1.bf16.msra.mxu0 %v612
      %646 = vmatprep.subr.bf16.mxu0 0
      %647 = vmatpush1.bf16.msra.mxu0 %v613
      %648 = vmatprep.subr.bf16.mxu0 0
      %649 = vmatpush1.bf16.msra.mxu0 %v614
      %650 = vmatprep.subr.bf16.mxu0 0
      %651 = vmatpush1.bf16.msra.mxu0 %v615
      %652 = vmatprep.subr.bf16.mxu0 0
      %653 = vmatpush1.bf16.msra.mxu0 %v616
      %654 = vmatprep.subr.bf16.mxu0 0
      %655 = vmatpush1.bf16.msra.mxu0 %v617
      %656 = vmatprep.subr.bf16.mxu0 0
      %657 = vmatpush1.bf16.msra.mxu0 %v618
      %658 = vmatprep.subr.bf16.mxu0 0
      %659 = vmatpush1.bf16.msra.mxu0 %v619
      %660 = vmatprep.subr.bf16.mxu0 0
      %661 = vmatpush1.bf16.msra.mxu0 %v620
      %662 = vmatprep.subr.bf16.mxu0 0
      %663 = vmatpush1.bf16.msra.mxu0 %v621
      %664 = vmatprep.subr.bf16.mxu0 0
      %665 = vmatpush1.bf16.msra.mxu0 %v622
      %666 = vmatprep.subr.bf16.mxu0 0
      %667 = vmatpush1.bf16.msra.mxu0 %v623
      %668 = vmatprep.subr.bf16.mxu0 0
      %669 = vmatpush1.bf16.msra.mxu0 %v624
      %670 = vmatprep.subr.bf16.mxu0 0
      %671 = vmatpush1.bf16.msra.mxu0 %v625
      %672 = vmatprep.subr.bf16.mxu0 0
      %673 = vmatpush1.bf16.msra.mxu0 %v626
      %674 = vmatprep.subr.bf16.mxu0 0
      %675 = vmatpush1.bf16.msra.mxu0 %v627
      %676 = vmatprep.mubr.bf16.mxu0 %v485
      %677 = vmatmul.mubr.bf16.gmra.mrb[0].mxu0 %v484
      %v678 = vpop.f32.mrb[0].mxu0
      %v679 = vadd.f32 0.0, %v678
      %v680 = vpop.f32.mrb[0].mxu0
      %v681 = vpop.f32.mrb[0].mxu0
      %v682 = vadd.f32 0.0, %v681
      %v683 = vpop.f32.mrb[0].mxu0
      %684 = vmatprep.mubr.bf16.mxu0 %v487
      %685 = vmatmul.mubr.bf16.gmra.mrb[0].mxu0 %v486
      %v686 = vpop.f32.mrb[0].mxu0
      %v687 = vadd.f32 0.0, %v686
      %v688 = vpop.f32.mrb[0].mxu0
      %v689 = vpop.f32.mrb[0].mxu0
      %v690 = vadd.f32 0.0, %v689
      %v691 = vpop.f32.mrb[0].mxu0
      %692 = vmatprep.mubr.bf16.mxu0 %v489
      %693 = vmatmul.mubr.bf16.gmra.mrb[0].mxu0 %v488
      %v694 = vpop.f32.mrb[0].mxu0
      %v695 = vadd.f32 0.0, %v694
      %v696 = vpop.f32.mrb[0].mxu0
      %v697 = vpop.f32.mrb[0].mxu0
      %v698 = vadd.f32 0.0, %v697
      %v699 = vpop.f32.mrb[0].mxu0
      %700 = vmatprep.mubr.bf16.mxu0 %v491
      %701 = vmatmul.mubr.bf16.gmra.mrb[0].mxu0 %v490
      %v702 = vpop.f32.mrb[0].mxu0
      %v703 = vadd.f32 0.0, %v702
      %v704 = vpop.f32.mrb[0].mxu0
      %v705 = vpop.f32.mrb[0].mxu0
      %v706 = vadd.f32 0.0, %v705
      %v707 = vpop.f32.mrb[0].mxu0
      %708 = vmatprep.mubr.bf16.mxu0 %v493
      %709 = vmatmul.mubr.bf16.gmra.mrb[0].mxu0 %v492
      %v710 = vpop.f32.mrb[0].mxu0
      %v711 = vadd.f32 0.0, %v710
      %v712 = vpop.f32.mrb[0].mxu0
      %v713 = vpop.f32.mrb[0].mxu0
      %v714 = vadd.f32 0.0, %v713
      %v715 = vpop.f32.mrb[0].mxu0
      %716 = vmatprep.mubr.bf16.mxu0 %v495
      %717 = vmatmul.mubr.bf16.gmra.mrb[0].mxu0 %v494
      %v718 = vpop.f32.mrb[0].mxu0
      %v719 = vadd.f32 0.0, %v718
      %v720 = vpop.f32.mrb[0].mxu0
      %v721 = vpop.f32.mrb[0].mxu0
      %v722 = vadd.f32 0.0, %v721
      %v723 = vpop.f32.mrb[0].mxu0
      %724 = vmatprep.mubr.bf16.mxu0 %v497
      %725 = vmatmul.mubr.bf16.gmra.mrb[0].mxu0 %v496
      %v726 = vpop.f32.mrb[0].mxu0
      %v727 = vadd.f32 0.0, %v726
      %v728 = vpop.f32.mrb[0].mxu0
      %v729 = vpop.f32.mrb[0].mxu0
      %v730 = vadd.f32 0.0, %v729
      %v731 = vpop.f32.mrb[0].mxu0
      %732 = vmatprep.mubr.bf16.mxu0 %v499
      %733 = vmatmul.mubr.bf16.gmra.mrb[0].mxu0 %v498
      %v734 = vpop.f32.mrb[0].mxu0
      %v735 = vadd.f32 0.0, %v734
      %v736 = vpop.f32.mrb[0].mxu0
      %v737 = vpop.f32.mrb[0].mxu0
      %v738 = vadd.f32 0.0, %v737
      %v739 = vpop.f32.mrb[0].mxu0
      %740 = vmatprep.mubr.bf16.mxu0 %v501
      %741 = vmatmul.mubr.bf16.gmra.mrb[0].mxu0 %v500
      %v742 = vpop.f32.mrb[0].mxu0
      %v743 = vadd.f32 0.0, %v742
      %v744 = vpop.f32.mrb[0].mxu0
      %v745 = vpop.f32.mrb[0].mxu0
      %v746 = vadd.f32 0.0, %v745
      %v747 = vpop.f32.mrb[0].mxu0
      %748 = vmatprep.mubr.bf16.mxu0 %v503
      %749 = vmatmul.mubr.bf16.gmra.mrb[0].mxu0 %v502
      %v750 = vpop.f32.mrb[0].mxu0
      %v751 = vadd.f32 0.0, %v750
      %v752 = vpop.f32.mrb[0].mxu0
      %v753 = vpop.f32.mrb[0].mxu0
      %v754 = vadd.f32 0.0, %v753
      %v755 = vpop.f32.mrb[0].mxu0
      %756 = vmatprep.mubr.bf16.mxu0 %v505
      %757 = vmatmul.mubr.bf16.gmra.mrb[0].mxu0 %v504
      %v758 = vpop.f32.mrb[0].mxu0
      %v759 = vadd.f32 0.0, %v758
      %v760 = vpop.f32.mrb[0].mxu0
      %v761 = vpop.f32.mrb[0].mxu0
      %v762 = vadd.f32 0.0, %v761
      %v763 = vpop.f32.mrb[0].mxu0
      %764 = vmatprep.mubr.bf16.mxu0 %v507
      %765 = vmatmul.mubr.bf16.gmra.mrb[0].mxu0 %v506
      %v766 = vpop.f32.mrb[0].mxu0
      %v767 = vadd.f32 0.0, %v766
      %v768 = vpop.f32.mrb[0].mxu0
      %v769 = vpop.f32.mrb[0].mxu0
      %v770 = vadd.f32 0.0, %v769
      %v771 = vpop.f32.mrb[0].mxu0
      %772 = vmatprep.mubr.bf16.mxu0 %v509
      %773 = vmatmul.mubr.bf16.gmra.mrb[0].mxu0 %v508
      %v774 = vpop.f32.mrb[0].mxu0
      %v775 = vadd.f32 0.0, %v774
      %v776 = vpop.f32.mrb[0].mxu0
      %v777 = vpop.f32.mrb[0].mxu0
      %v778 = vadd.f32 0.0, %v777
      %v779 = vpop.f32.mrb[0].mxu0
      %780 = vmatprep.mubr.bf16.mxu0 %v511
      %781 = vmatmul.mubr.bf16.gmra.mrb[0].mxu0 %v510
      %v782 = vpop.f32.mrb[0].mxu0
      %v783 = vadd.f32 0.0, %v782
      %v784 = vpop.f32.mrb[0].mxu0
      %v785 = vpop.f32.mrb[0].mxu0
      %v786 = vadd.f32 0.0, %v785
      %v787 = vpop.f32.mrb[0].mxu0
      %788 = vmatprep.mubr.bf16.mxu0 %v513
      %789 = vmatmul.mubr.bf16.gmra.mrb[0].mxu0 %v512
      %v790 = vpop.f32.mrb[0].mxu0
      %v791 = vadd.f32 0.0, %v790
      %v792 = vpop.f32.mrb[0].mxu0
      %v793 = vpop.f32.mrb[0].mxu0
      %v794 = vadd.f32 0.0, %v793
      %v795 = vpop.f32.mrb[0].mxu0
      %796 = vmatprep.mubr.bf16.mxu0 %v515
      %797 = vmatmul.mubr.bf16.gmra.mrb[0].mxu0 %v514
      %v798 = vpop.f32.mrb[0].mxu0
      %v799 = vadd.f32 0.0, %v798
      %v800 = vpop.f32.mrb[0].mxu0
      %v801 = vpop.f32.mrb[0].mxu0
      %v802 = vadd.f32 0.0, %v801
      %v803 = vpop.f32.mrb[0].mxu0
      %804 = vdwg.mxu0
      %v805 = vadd.f32 %v292, %v679
      %v806 = vadd.f32 %v293, %v682
      %v807 = vadd.f32 %v294, %v687
      %v808 = vadd.f32 %v295, %v690
      %v809 = vadd.f32 %v296, %v695
      %v810 = vadd.f32 %v297, %v698
      %v811 = vadd.f32 %v298, %v703
      %v812 = vadd.f32 %v299, %v706
      %v813 = vadd.f32 %v300, %v711
      %v814 = vadd.f32 %v301, %v714
      %v815 = vadd.f32 %v302, %v719
      %v816 = vadd.f32 %v303, %v722
      %v817 = vadd.f32 %v304, %v727
      %v818 = vadd.f32 %v305, %v730
      %v819 = vadd.f32 %v306, %v735
      %v820 = vadd.f32 %v307, %v738
      %v821 = vadd.f32 %v308, %v743
      %v822 = vadd.f32 %v309, %v746
      %v823 = vadd.f32 %v310, %v751
      %v824 = vadd.f32 %v311, %v754
      %v825 = vadd.f32 %v312, %v759
      %v826 = vadd.f32 %v313, %v762
      %v827 = vadd.f32 %v314, %v767
      %v828 = vadd.f32 %v315, %v770
      %v829 = vadd.f32 %v316, %v775
      %v830 = vadd.f32 %v317, %v778
      %v831 = vadd.f32 %v318, %v783
      %v832 = vadd.f32 %v319, %v786
      %v833 = vadd.f32 %v320, %v791
      %v834 = vadd.f32 %v321, %v794
      %v835 = vadd.f32 %v322, %v799
      %v836 = vadd.f32 %v323, %v802
      %vm837 = vcmask 523264
      %838 = vst.msk [vmem:[#allocation2] sm:$0xff] %vm837, %v805
      %839 = vst.msk [vmem:[#allocation2 + $0x8] sm:$0xff] %vm837, %v806
      %840 = vst.msk [vmem:[#allocation2 + $0x10] sm:$0xff] %vm837, %v807
      %841 = vst.msk [vmem:[#allocation2 + $0x18] sm:$0xff] %vm837, %v808
      %842 = vst.msk [vmem:[#allocation2 + $0x20] sm:$0xff] %vm837, %v809
      %843 = vst.msk [vmem:[#allocation2 + $0x28] sm:$0xff] %vm837, %v810
      %844 = vst.msk [vmem:[#allocation2 + $0x30] sm:$0xff] %vm837, %v811
      %845 = vst.msk [vmem:[#allocation2 + $0x38] sm:$0xff] %vm837, %v812
      %846 = vst.msk [vmem:[#allocation2 + $0x40] sm:$0xff] %vm837, %v813
      %847 = vst.msk [vmem:[#allocation2 + $0x48] sm:$0xff] %vm837, %v814
      %848 = vst.msk [vmem:[#allocation2 + $0x50] sm:$0xff] %vm837, %v815
      %849 = vst.msk [vmem:[#allocation2 + $0x58] sm:$0xff] %vm837, %v816
      %850 = vst.msk [vmem:[#allocation2 + $0x60] sm:$0xff] %vm837, %v817
      %851 = vst.msk [vmem:[#allocation2 + $0x68] sm:$0xff] %vm837, %v818
      %852 = vst.msk [vmem:[#allocation2 + $0x70] sm:$0xff] %vm837, %v819
      %853 = vst.msk [vmem:[#allocation2 + $0x78] sm:$0xff] %vm837, %v820
      %854 = vst.msk [vmem:[#allocation2 + $0x80] sm:$0xff] %vm837, %v821
      %855 = vst.msk [vmem:[#allocation2 + $0x88] sm:$0xff] %vm837, %v822
      %856 = vst.msk [vmem:[#allocation2 + $0x90] sm:$0xff] %vm837, %v823
      %857 = vst.msk [vmem:[#allocation2 + $0x98] sm:$0xff] %vm837, %v824
      %858 = vst.msk [vmem:[#allocation2 + $0xa0] sm:$0xff] %vm837, %v825
      %859 = vst.msk [vmem:[#allocation2 + $0xa8] sm:$0xff] %vm837, %v826
      %860 = vst.msk [vmem:[#allocation2 + $0xb0] sm:$0xff] %vm837, %v827
      %861 = vst.msk [vmem:[#allocation2 + $0xb8] sm:$0xff] %vm837, %v828
      %862 = vst.msk [vmem:[#allocation2 + $0xc0] sm:$0xff] %vm837, %v829
      %863 = vst.msk [vmem:[#allocation2 + $0xc8] sm:$0xff] %vm837, %v830
      %864 = vst.msk [vmem:[#allocation2 + $0xd0] sm:$0xff] %vm837, %v831
      %865 = vst.msk [vmem:[#allocation2 + $0xd8] sm:$0xff] %vm837, %v832
      %866 = vst.msk [vmem:[#allocation2 + $0xe0] sm:$0xff] %vm837, %v833
      %867 = vst.msk [vmem:[#allocation2 + $0xe8] sm:$0xff] %vm837, %v834
      %868 = vst.msk [vmem:[#allocation2 + $0xf0] sm:$0xff] %vm837, %v835
      %869 = vst.msk [vmem:[#allocation2 + $0xf8] sm:$0xff] %vm837, %v836
      // Predicated region
      $region41: #{matmul_bn.1} parent=35 // pred_check
        %p870 = pneg %p255
      $region42: #{matmul_bn.1} parent=35 // pred_check_branch
        %872 = sbr.rel (%p870) target = $region44
      $region43: #{matmul_bn.1} parent=35 // pred_region
        %v873 = vld [vmem:[#allocation2] sm:$0xff]
        %v874 = vld [vmem:[#allocation2 + $0x8] sm:$0xff]
        %v875 = vld [vmem:[#allocation2 + $0x10] sm:$0xff]
        %v876 = vld [vmem:[#allocation2 + $0x18] sm:$0xff]
        %v877 = vld [vmem:[#allocation2 + $0x20] sm:$0xff]
        %v878 = vld [vmem:[#allocation2 + $0x28] sm:$0xff]
        %v879 = vld [vmem:[#allocation2 + $0x30] sm:$0xff]
        %v880 = vld [vmem:[#allocation2 + $0x38] sm:$0xff]
        %v881 = vld [vmem:[#allocation2 + $0x40] sm:$0xff]
        %v882 = vld [vmem:[#allocation2 + $0x48] sm:$0xff]
        %v883 = vld [vmem:[#allocation2 + $0x50] sm:$0xff]
        %v884 = vld [vmem:[#allocation2 + $0x58] sm:$0xff]
        %v885 = vld [vmem:[#allocation2 + $0x60] sm:$0xff]
        %v886 = vld [vmem:[#allocation2 + $0x68] sm:$0xff]
        %v887 = vld [vmem:[#allocation2 + $0x70] sm:$0xff]
        %v888 = vld [vmem:[#allocation2 + $0x78] sm:$0xff]
        %v889 = vld [vmem:[#allocation2 + $0x80] sm:$0xff]
        %v890 = vld [vmem:[#allocation2 + $0x88] sm:$0xff]
        %v891 = vld [vmem:[#allocation2 + $0x90] sm:$0xff]
        %v892 = vld [vmem:[#allocation2 + $0x98] sm:$0xff]
        %v893 = vld [vmem:[#allocation2 + $0xa0] sm:$0xff]
        %v894 = vld [vmem:[#allocation2 + $0xa8] sm:$0xff]
        %v895 = vld [vmem:[#allocation2 + $0xb0] sm:$0xff]
        %v896 = vld [vmem:[#allocation2 + $0xb8] sm:$0xff]
        %v897 = vld [vmem:[#allocation2 + $0xc0] sm:$0xff]
        %v898 = vld [vmem:[#allocation2 + $0xc8] sm:$0xff]
        %v899 = vld [vmem:[#allocation2 + $0xd0] sm:$0xff]
        %v900 = vld [vmem:[#allocation2 + $0xd8] sm:$0xff]
        %v901 = vld [vmem:[#allocation2 + $0xe0] sm:$0xff]
        %v902 = vld [vmem:[#allocation2 + $0xe8] sm:$0xff]
        %v903 = vld [vmem:[#allocation2 + $0xf0] sm:$0xff]
        %v904 = vld [vmem:[#allocation2 + $0xf8] sm:$0xff]
        %v905 = vld [vmem:[%s2] sm:$0x1]
        %v907 = vlaneseq
        %v908 = vshrl.u32 %v907, 7
        %v909 = vsub.s32 0, %v908
        %v910 = vrot.slane %v905, %v909
        %v912 = vmul.f32 %v873, %v910
        %v913 = vmul.f32 %v874, %v910
        %v914 = vmul.f32 %v875, %v910
        %v915 = vmul.f32 %v876, %v910
        %v916 = vmul.f32 %v877, %v910
        %v917 = vmul.f32 %v878, %v910
        %v918 = vmul.f32 %v879, %v910
        %v919 = vmul.f32 %v880, %v910
        %v920 = vmul.f32 %v881, %v910
        %v921 = vmul.f32 %v882, %v910
        %v922 = vmul.f32 %v883, %v910
        %v923 = vmul.f32 %v884, %v910
        %v924 = vmul.f32 %v885, %v910
        %v925 = vmul.f32 %v886, %v910
        %v926 = vmul.f32 %v887, %v910
        %v927 = vmul.f32 %v888, %v910
        %v928 = vmul.f32 %v889, %v910
        %v929 = vmul.f32 %v890, %v910
        %v930 = vmul.f32 %v891, %v910
        %v931 = vmul.f32 %v892, %v910
        %v932 = vmul.f32 %v893, %v910
        %v933 = vmul.f32 %v894, %v910
        %v934 = vmul.f32 %v895, %v910
        %v935 = vmul.f32 %v896, %v910
        %v936 = vmul.f32 %v897, %v910
        %v937 = vmul.f32 %v898, %v910
        %v938 = vmul.f32 %v899, %v910
        %v939 = vmul.f32 %v900, %v910
        %v940 = vmul.f32 %v901, %v910
        %v941 = vmul.f32 %v902, %v910
        %v942 = vmul.f32 %v903, %v910
        %v943 = vmul.f32 %v904, %v910
        %v944 = vld [vmem:[%s3] sm:$0x1]
        %v946 = vlaneseq
        %v947 = vshrl.u32 %v946, 7
        %v948 = vsub.s32 0, %v947
        %v949 = vrot.slane %v944, %v948
        %v951 = vadd.f32 %v912, %v949
        %v952 = vadd.f32 %v913, %v949
        %v953 = vadd.f32 %v914, %v949
        %v954 = vadd.f32 %v915, %v949
        %v955 = vadd.f32 %v916, %v949
        %v956 = vadd.f32 %v917, %v949
        %v957 = vadd.f32 %v918, %v949
        %v958 = vadd.f32 %v919, %v949
        %v959 = vadd.f32 %v920, %v949
        %v960 = vadd.f32 %v921, %v949
        %v961 = vadd.f32 %v922, %v949
        %v962 = vadd.f32 %v923, %v949
        %v963 = vadd.f32 %v924, %v949
        %v964 = vadd.f32 %v925, %v949
        %v965 = vadd.f32 %v926, %v949
        %v966 = vadd.f32 %v927, %v949
        %v967 = vadd.f32 %v928, %v949
        %v968 = vadd.f32 %v929, %v949
        %v969 = vadd.f32 %v930, %v949
        %v970 = vadd.f32 %v931, %v949
        %v971 = vadd.f32 %v932, %v949
        %v972 = vadd.f32 %v933, %v949
        %v973 = vadd.f32 %v934, %v949
        %v974 = vadd.f32 %v935, %v949
        %v975 = vadd.f32 %v936, %v949
        %v976 = vadd.f32 %v937, %v949
        %v977 = vadd.f32 %v938, %v949
        %v978 = vadd.f32 %v939, %v949
        %v979 = vadd.f32 %v940, %v949
        %v980 = vadd.f32 %v941, %v949
        %v981 = vadd.f32 %v942, %v949
        %v982 = vadd.f32 %v943, %v949
        %v983 = vmax.f32 %v951, 0.0
        %v984 = vmax.f32 %v952, 0.0
        %v985 = vmax.f32 %v953, 0.0
        %v986 = vmax.f32 %v954, 0.0
        %v987 = vmax.f32 %v955, 0.0
        %v988 = vmax.f32 %v956, 0.0
        %v989 = vmax.f32 %v957, 0.0
        %v990 = vmax.f32 %v958, 0.0
        %v991 = vmax.f32 %v959, 0.0
        %v992 = vmax.f32 %v960, 0.0
        %v993 = vmax.f32 %v961, 0.0
        %v994 = vmax.f32 %v962, 0.0
        %v995 = vmax.f32 %v963, 0.0
        %v996 = vmax.f32 %v964, 0.0
        %v997 = vmax.f32 %v965, 0.0
        %v998 = vmax.f32 %v966, 0.0
        %v999 = vmax.f32 %v967, 0.0
        %v1000 = vmax.f32 %v968, 0.0
        %v1001 = vmax.f32 %v969, 0.0
        %v1002 = vmax.f32 %v970, 0.0
        %v1003 = vmax.f32 %v971, 0.0
        %v1004 = vmax.f32 %v972, 0.0
        %v1005 = vmax.f32 %v973, 0.0
        %v1006 = vmax.f32 %v974, 0.0
        %v1007 = vmax.f32 %v975, 0.0
        %v1008 = vmax.f32 %v976, 0.0
        %v1009 = vmax.f32 %v977, 0.0
        %v1010 = vmax.f32 %v978, 0.0
        %v1011 = vmax.f32 %v979, 0.0
        %v1012 = vmax.f32 %v980, 0.0
        %v1013 = vmax.f32 %v981, 0.0
        %v1014 = vmax.f32 %v982, 0.0
        %v1015 = vpack.c.bf16 %v984, %v983
        %v1016 = vpack.c.bf16 %v986, %v985
        %v1017 = vpack.c.bf16 %v988, %v987
        %v1018 = vpack.c.bf16 %v990, %v989
        %v1019 = vpack.c.bf16 %v992, %v991
        %v1020 = vpack.c.bf16 %v994, %v993
        %v1021 = vpack.c.bf16 %v996, %v995
        %v1022 = vpack.c.bf16 %v998, %v997
        %v1023 = vpack.c.bf16 %v1000, %v999
        %v1024 = vpack.c.bf16 %v1002, %v1001
        %v1025 = vpack.c.bf16 %v1004, %v1003
        %v1026 = vpack.c.bf16 %v1006, %v1005
        %v1027 = vpack.c.bf16 %v1008, %v1007
        %v1028 = vpack.c.bf16 %v1010, %v1009
        %v1029 = vpack.c.bf16 %v1012, %v1011
        %v1030 = vpack.c.bf16 %v1014, %v1013
        %v1047 = vunpack.c.l.b16 %v1015
        %v1048 = vunpack.c.h.b16 %v1015
        %v1049 = vunpack.c.l.b16 %v1016
        %v1050 = vunpack.c.h.b16 %v1016
        %v1051 = vunpack.c.l.b16 %v1017
        %v1052 = vunpack.c.h.b16 %v1017
        %v1053 = vunpack.c.l.b16 %v1018
        %v1054 = vunpack.c.h.b16 %v1018
        %v1055 = vunpack.c.l.b16 %v1019
        %v1056 = vunpack.c.h.b16 %v1019
        %v1057 = vunpack.c.l.b16 %v1020
        %v1058 = vunpack.c.h.b16 %v1020
        %v1059 = vunpack.c.l.b16 %v1021
        %v1060 = vunpack.c.h.b16 %v1021
        %v1061 = vunpack.c.l.b16 %v1022
        %v1062 = vunpack.c.h.b16 %v1022
        %v1063 = vunpack.c.l.b16 %v1023
        %v1064 = vunpack.c.h.b16 %v1023
        %v1065 = vunpack.c.l.b16 %v1024
        %v1066 = vunpack.c.h.b16 %v1024
        %v1067 = vunpack.c.l.b16 %v1025
        %v1068 = vunpack.c.h.b16 %v1025
        %v1069 = vunpack.c.l.b16 %v1026
        %v1070 = vunpack.c.h.b16 %v1026
        %v1071 = vunpack.c.l.b16 %v1027
        %v1072 = vunpack.c.h.b16 %v1027
        %v1073 = vunpack.c.l.b16 %v1028
        %v1074 = vunpack.c.h.b16 %v1028
        %v1075 = vunpack.c.l.b16 %v1029
        %v1076 = vunpack.c.h.b16 %v1029
        %v1077 = vunpack.c.l.b16 %v1030
        %v1078 = vunpack.c.h.b16 %v1030
        %v1079 = vpack.c.b16 %v1047, %v1047
        %v1080 = vpack.c.b16 %v1048, %v1048
        %v1081 = vpack.c.b16 %v1049, %v1049
        %v1082 = vpack.c.b16 %v1050, %v1050
        %v1083 = vpack.c.b16 %v1051, %v1051
        %v1084 = vpack.c.b16 %v1052, %v1052
        %v1085 = vpack.c.b16 %v1053, %v1053
        %v1086 = vpack.c.b16 %v1054, %v1054
        %v1087 = vpack.c.b16 %v1055, %v1055
        %v1088 = vpack.c.b16 %v1056, %v1056
        %v1089 = vpack.c.b16 %v1057, %v1057
        %v1090 = vpack.c.b16 %v1058, %v1058
        %v1091 = vpack.c.b16 %v1059, %v1059
        %v1092 = vpack.c.b16 %v1060, %v1060
        %v1093 = vpack.c.b16 %v1061, %v1061
        %v1094 = vpack.c.b16 %v1062, %v1062
        %v1095 = vpack.c.b16 %v1063, %v1063
        %v1096 = vpack.c.b16 %v1064, %v1064
        %v1097 = vpack.c.b16 %v1065, %v1065
        %v1098 = vpack.c.b16 %v1066, %v1066
        %v1099 = vpack.c.b16 %v1067, %v1067
        %v1100 = vpack.c.b16 %v1068, %v1068
        %v1101 = vpack.c.b16 %v1069, %v1069
        %v1102 = vpack.c.b16 %v1070, %v1070
        %v1103 = vpack.c.b16 %v1071, %v1071
        %v1104 = vpack.c.b16 %v1072, %v1072
        %v1105 = vpack.c.b16 %v1073, %v1073
        %v1106 = vpack.c.b16 %v1074, %v1074
        %v1107 = vpack.c.b16 %v1075, %v1075
        %v1108 = vpack.c.b16 %v1076, %v1076
        %v1109 = vpack.c.b16 %v1077, %v1077
        %v1110 = vpack.c.b16 %v1078, %v1078
        %vm1143 = vcmask 519168
        %1144 = vst.msk [vmem:[%s252] sm:$0xf] %vm1143, %v1079
        %1145 = vst.msk [vmem:[%s252 + $0x4] sm:$0xf] %vm1143, %v1080
        %1146 = vst.msk [vmem:[%s252 + $0x8] sm:$0xf] %vm1143, %v1081
        %1147 = vst.msk [vmem:[%s252 + $0xc] sm:$0xf] %vm1143, %v1082
        %1148 = vst.msk [vmem:[%s252 + $0x10] sm:$0xf] %vm1143, %v1083
        %1149 = vst.msk [vmem:[%s252 + $0x14] sm:$0xf] %vm1143, %v1084
        %1150 = vst.msk [vmem:[%s252 + $0x18] sm:$0xf] %vm1143, %v1085
        %1151 = vst.msk [vmem:[%s252 + $0x1c] sm:$0xf] %vm1143, %v1086
        %1152 = vst.msk [vmem:[%s252 + $0x20] sm:$0xf] %vm1143, %v1087
        %1153 = vst.msk [vmem:[%s252 + $0x24] sm:$0xf] %vm1143, %v1088
        %1154 = vst.msk [vmem:[%s252 + $0x28] sm:$0xf] %vm1143, %v1089
        %1155 = vst.msk [vmem:[%s252 + $0x2c] sm:$0xf] %vm1143, %v1090
        %1156 = vst.msk [vmem:[%s252 + $0x30] sm:$0xf] %vm1143, %v1091
        %1157 = vst.msk [vmem:[%s252 + $0x34] sm:$0xf] %vm1143, %v1092
        %1158 = vst.msk [vmem:[%s252 + $0x38] sm:$0xf] %vm1143, %v1093
        %1159 = vst.msk [vmem:[%s252 + $0x3c] sm:$0xf] %vm1143, %v1094
        %1160 = vst.msk [vmem:[%s252 + $0x40] sm:$0xf] %vm1143, %v1095
        %1161 = vst.msk [vmem:[%s252 + $0x44] sm:$0xf] %vm1143, %v1096
        %1162 = vst.msk [vmem:[%s252 + $0x48] sm:$0xf] %vm1143, %v1097
        %1163 = vst.msk [vmem:[%s252 + $0x4c] sm:$0xf] %vm1143, %v1098
        %1164 = vst.msk [vmem:[%s252 + $0x50] sm:$0xf] %vm1143, %v1099
        %1165 = vst.msk [vmem:[%s252 + $0x54] sm:$0xf] %vm1143, %v1100
        %1166 = vst.msk [vmem:[%s252 + $0x58] sm:$0xf] %vm1143, %v1101
        %1167 = vst.msk [vmem:[%s252 + $0x5c] sm:$0xf] %vm1143, %v1102
        %1168 = vst.msk [vmem:[%s252 + $0x60] sm:$0xf] %vm1143, %v1103
        %1169 = vst.msk [vmem:[%s252 + $0x64] sm:$0xf] %vm1143, %v1104
        %1170 = vst.msk [vmem:[%s252 + $0x68] sm:$0xf] %vm1143, %v1105
        %1171 = vst.msk [vmem:[%s252 + $0x6c] sm:$0xf] %vm1143, %v1106
        %1172 = vst.msk [vmem:[%s252 + $0x70] sm:$0xf] %vm1143, %v1107
        %1173 = vst.msk [vmem:[%s252 + $0x74] sm:$0xf] %vm1143, %v1108
        %1174 = vst.msk [vmem:[%s252 + $0x78] sm:$0xf] %vm1143, %v1109
        %1175 = vst.msk [vmem:[%s252 + $0x7c] sm:$0xf] %vm1143, %v1110
      $region44: #{matmul_bn.1} parent=35 // pred_fallthru
        _
      %s1176 = smul.u32 32, %s19
      %p1177 = scmp.lt.s32.totalorder %s1176, 63
      %s1178 = scalar_select %p1177, %s1176, 63
      %s1179 = smul.addr %s1178, 4
      %s1180 = scalar_lea.vmem %s4, %s1179
      // Predicated region
      $region45: #{matmul_bn.1} parent=35 // pred_check
        %p1181 = pneg %p141
      $region46: #{matmul_bn.1} parent=35 // pred_check_branch
        %1183 = sbr.rel (%p1181) target = $region48
      $region47: #{matmul_bn.1} parent=35 // pred_region
        %s1184 = smul.u32 32, %s19
      $region48: #{matmul_bn.1} parent=35 // pred_fallthru
        _
    $region36: #{matmul_bn.1} parent=5 // pred_fallthru
      _
    %p1185 = scmp.le.s32.totalorder 2, %s10
    // Predicated region
    $region49: #{matmul_bn.1} parent=5 // pred_check
      %p1186 = pneg %p1185
    $region50: #{matmul_bn.1} parent=5 // pred_check_branch
      %1188 = sbr.rel (%p1186) target = $region52
    $region51: #{matmul_bn.1} parent=5 // pred_region
      %s1189 = ssub.s32 %s10, 2
      // Predicated region
      $region53: #{matmul_bn.1} parent=51 // pred_check
        %p1190 = pneg %p147
      $region54: #{matmul_bn.1} parent=51 // pred_check_branch
        %1192 = sbr.rel (%p1190) target = $region56
      $region55: #{matmul_bn.1} parent=51 // pred_region
        %s1193 = smul.u32 32, %s21
        %p1194 = scmp.lt.s32.totalorder %s1193, 63
        %s1195 = scalar_select %p1194, %s1193, 63
        %s1196 = smul.addr %s1195, 4
        %s1197 = scalar_lea.vmem %s4, %s1196
      $region56: #{matmul_bn.1} parent=51 // pred_fallthru
        _
    $region52: #{matmul_bn.1} parent=5 // pred_fallthru
      _
  $region6: #{matmul_bn.1} parent=0 // loop_footer
    %s14 = sadd.s32 1, %s10
  $region7: #{matmul_bn.1} parent=0 // loop_footer_branch
    %9 = sbr.rel target = $region3
  $region8: #{matmul_bn.1} parent=0 // loop_exit
    _

</llo_original>
